<compile_context>
chip_gen: v7x
topology: tpu7x:2x2x1
jax: 0.10.0
libtpu: 0.0.40
codegen_flags: <defaults>
</compile_context>

<pallas_src>
import functools
import math

import jax
import jax.numpy as jnp
from jax.experimental import pallas as pl
from jax.experimental.pallas import tpu as pltpu

# Irreps config from the docstring example: Linear("4x0e+16x1o", "8x0e+8x1o")
IRREPS_IN = [(4, (0, 1)), (16, (1, -1))]    # (multiplicity, (l, parity))
IRREPS_OUT = [(8, (0, 1)), (8, (1, -1))]


def _ir_dim(ir):
    return 2 * ir[0] + 1


def _irreps_dim(irreps):
    return sum(mul * _ir_dim(ir) for mul, ir in irreps)


def _weight_numel(irreps_in, irreps_out):
    return sum(mi * mo for mi, iri in irreps_in for mo, iro in irreps_out if iri == iro)


def _instructions(irreps_in, irreps_out):
    return [(i, j) for i, (_, iri) in enumerate(irreps_in)
            for j, (_, iro) in enumerate(irreps_out) if iri == iro]


def _offsets(irreps):
    offs, o = [], 0
    for mul, ir in irreps:
        offs.append(o)
        o += mul * _ir_dim(ir)
    return offs


def _round_up(n, m):
    return (n + m - 1) // m * m


def expand_weight(w_flat, irreps_in=IRREPS_IN, irreps_out=IRREPS_OUT):
    """Expand the flat e3nn path-weight vector into a dense (dim_in, dim_out) matrix whose
    block structure reproduces exactly the per-path `alpha * einsum('uw,zui->zwi', w, x)`.
    Cheap glue -- precompute once per weight update, not per forward call."""
    din, dout = _irreps_dim(irreps_in), _irreps_dim(irreps_out)
    in_off, out_off = _offsets(irreps_in), _offsets(irreps_out)
    instr = _instructions(irreps_in, irreps_out)
    W = jnp.zeros((din, dout), dtype=w_flat.dtype)
    flat = 0
    for i_in, i_out in instr:
        mul_in, ir_in = irreps_in[i_in]
        mul_out, _ = irreps_out[i_out]
        d = _ir_dim(ir_in)
        nw = mul_in * mul_out
        w = w_flat[flat:flat + nw].reshape(mul_in, mul_out)
        flat += nw
        fan = sum(1 for _, j in instr if j == i_out)
        alpha = 1.0 / math.sqrt(mul_in * fan)
        # W_big[u*d + i, w*d + j] = alpha * w[u, w] * delta(i, j)
        blk = (alpha * jnp.einsum('uw,ij->uiwj', w, jnp.eye(d, dtype=w_flat.dtype))
               ).reshape(mul_in * d, mul_out * d)
        W = W.at[in_off[i_in]:in_off[i_in] + mul_in * d,
                 out_off[i_out]:out_off[i_out] + mul_out * d].add(blk)
    return W


def _linear_kernel(x_ref, w_ref, o_ref):
    # One batch tile: (TBg, G*din) @ (G*din, G*dout) -> (TBg, G*dout) on the MXU,
    # f32 accumulate.  The weight block is identical for every grid step (VMEM-resident).
    o_ref[...] = jnp.dot(x_ref[...], w_ref[...],
                         preferred_element_type=jnp.float32).astype(o_ref.dtype)


def _tpu_generation():
    """Coarse chip-generation detection for tile/group defaults (robust fallback: v6e)."""
    try:
        kind = jax.devices()[0].device_kind.lower()
    except Exception:
        return 6
    if "v5 lite" in kind or "v5e" in kind or "v5lite" in kind:
        return 5
    if "v7" in kind:
        return 7
    if "v6" in kind:
        return 6
    return 6


# group   : row-replication factor for the block-diagonal lane-dense layout (cap).
# tb_rows : batch-tile size in ORIGINAL rows (multiple of 8*group), sized against each
#           chip's HBM BW vs ~0.35us/grid-step overhead.  Double-buffered VMEM stays
#           within every generation's default scoped budget thanks to the dense layout.
# min_steps: v7x has 2 TensorCores -> keep >=4 grid steps so a ragged last block can't
#            leave one core idle; v5e/v6e iterate the grid serially, so no minimum.
_GEN_CFG = {
    5: dict(group=2, tb_rows=4096, min_steps=1),    # v5e: G=2 keeps f32 MXU off roofline
    6: dict(group=4, tb_rows=8192, min_steps=1),    # v6e
    7: dict(group=4, tb_rows=16384, min_steps=4),   # v7x
}


def o3_linear_apply(features, w_exp, tb_rows=None, group=None, out_dtype=None):
    """Pallas forward with a precomputed expanded weight: (..., din) -> (..., dout)."""
    din, dout = w_exp.shape
    assert features.shape[-1] == din
    lead = features.shape[:-1]
    out_dtype = features.dtype if out_dtype is None else out_dtype
    x = features.reshape(-1, din)
    z = x.shape[0]

    if z == 0:  # nothing to do -- avoid launching a kernel over an empty array
        return jnp.zeros(lead + (dout,), out_dtype)

    cfg = _GEN_CFG.get(_tpu_generation(), _GEN_CFG[6])
    g_max = cfg["group"] if group is None else group
    tb_rows = cfg["tb_rows"] if tb_rows is None else tb_rows
    min_steps = cfg["min_steps"]

    # Largest power-of-two replication factor (<= g_max) dividing z: the grouping reshape
    # stays a free contiguous reshape -- no jnp.pad (i.e. no extra HBM pass over x).
    g = 1
    while g * 2 <= g_max and z % (g * 2) == 0:
        g *= 2

    zg, din_g, dout_g = z // g, g * din, g * dout
    xg = x.reshape(zg, din_g)                                  # free contiguous reshape
    # Block-diagonal replication of the expanded weight: [x_0 .. x_{g-1}] @ kron(I_g, W)
    # = [x_0 W .. x_{g-1} W].  Numerically identical to the ungrouped matmul.
    w_big = jnp.kron(jnp.eye(g, dtype=w_exp.dtype), w_exp).astype(features.dtype)

    # Batch tile (in grouped rows): multiple of 8 (sublane), large to amortize the
    # ~0.35us/step grid overhead, capped to the problem size (and to >= min_steps steps
    # on v7x for megacore balance).  Ragged last blocks are masked by Pallas; output rows
    # map 1:1 to input rows so padded-row garbage is never stored.
    tb_g = max(8, tb_rows // g)
    tb_g = min(tb_g, _round_up(pl.cdiv(zg, min_steps), 8))
    grid = (pl.cdiv(zg, tb_g),)

    out = pl.pallas_call(
        _linear_kernel,
        out_shape=jax.ShapeDtypeStruct((zg, dout_g), out_dtype),
        grid=grid,
        in_specs=[pl.BlockSpec((tb_g, din_g), lambda i: (i, 0)),
                  pl.BlockSpec((din_g, dout_g), lambda i: (0, 0))],  # VMEM-resident weight
        out_specs=pl.BlockSpec((tb_g, dout_g), lambda i: (i, 0)),
        compiler_params=pltpu.CompilerParams(dimension_semantics=("parallel",)),
    )(xg, w_big)
    # (zg, g*dout) is exactly the row-major layout of (z, dout): reshape is free.
    return out.reshape(lead + (dout,))


def o3_linear(features, w_flat, irreps_in=IRREPS_IN, irreps_out=IRREPS_OUT, **kw):
    """Convenience wrapper matching the module forward(features, weight)."""
    w_exp = expand_weight(w_flat, irreps_in, irreps_out).astype(features.dtype)
    return o3_linear_apply(features, w_exp, **kw)


def o3_linear_ref(features, w_flat, irreps_in=IRREPS_IN, irreps_out=IRREPS_OUT):
    """Pure-JAX reference replicating e3nn's codegen path-by-path (for validation)."""
    din, dout = _irreps_dim(irreps_in), _irreps_dim(irreps_out)
    lead = features.shape[:-1]
    x = features.reshape(-1, din)
    z = x.shape[0]
    in_off, out_off = _offsets(irreps_in), _offsets(irreps_out)
    instr = _instructions(irreps_in, irreps_out)
    out_blocks = [jnp.zeros((z, mul * _ir_dim(ir)), features.dtype) for mul, ir in irreps_out]
    flat = 0
    for i_in, i_out in instr:
        mul_in, ir_in = irreps_in[i_in]
        mul_out, _ = irreps_out[i_out]
        d = _ir_dim(ir_in)
        nw = mul_in * mul_out
        w = w_flat[flat:flat + nw].reshape(mul_in, mul_out)
        flat += nw
        fan = sum(1 for _, j in instr if j == i_out)
        alpha = 1.0 / math.sqrt(mul_in * fan)
        xb = x[:, in_off[i_in]:in_off[i_in] + mul_in * d].reshape(z, mul_in, d)
        eo = alpha * jnp.einsum('uw,zui->zwi', w, xb)
        out_blocks[i_out] = out_blocks[i_out] + eo.reshape(z, mul_out * d)
    out = jnp.concatenate(out_blocks, axis=1)
    return out.reshape(lead + (dout,))


if __name__ == "__main__":
    key = jax.random.PRNGKey(0)
    k_x, k_w, k_x2, k_x3 = jax.random.split(key, 4)

    wn = _weight_numel(IRREPS_IN, IRREPS_OUT)      # 160, matches the e3nn docstring
    din = _irreps_dim(IRREPS_IN)                   # 52
    dout = _irreps_dim(IRREPS_OUT)                 # 32

    # Deterministic synthetic parameters (shared/internal weights: shape (weight_numel,))
    weight = jax.random.normal(k_w, (wn,), dtype=jnp.float32)

    # Precompute the expanded (52, 32) weight once per weight update; jit the hot path.
    w_exp = expand_weight(weight)
    apply_fn = jax.jit(functools.partial(o3_linear_apply, w_exp=w_exp))

    # Small example with extra leading dims: (batch=2, seq=8, 52) -> (2, 8, 32)
    features = jax.random.normal(k_x, (2, 8, din), dtype=jnp.float32)
    out = jax.block_until_ready(apply_fn(features))
    ref = o3_linear_ref(features, weight)
    assert out.shape == (2, 8, dout)
    assert jnp.allclose(out, ref, atol=1e-5, rtol=1e-5)

    # Ragged case: Z not divisible by the batch tile (masked last block, G=4/2 grouping).
    features2 = jax.random.normal(k_x2, (200, din), dtype=jnp.float32)
    out2 = jax.block_until_ready(apply_fn(features2))
    ref2 = o3_linear_ref(features2, weight)
    assert out2.shape == (200, dout)
    assert jnp.allclose(out2, ref2, atol=1e-5, rtol=1e-5)

    # Odd Z: exercises the G=1 fallback (no grouping, still masked ragged block).
    features3 = jax.random.normal(k_x3, (37, din), dtype=jnp.float32)
    out3 = jax.block_until_ready(apply_fn(features3))
    ref3 = o3_linear_ref(features3, weight)
    assert out3.shape == (37, dout)
    assert jnp.allclose(out3, ref3, atol=1e-5, rtol=1e-5)

    print("KERNEL_OK")
</pallas_src>

<mosaic_0001>
module attributes {stable_mosaic.version = 11 : i64} {
  func.func @_linear_kernel(%arg0: i32, %arg1: memref<8x208xf32, #tpu.memory_space<vmem>>, %arg2: memref<208x128xf32, #tpu.memory_space<vmem>>, %arg3: memref<8x128xf32, #tpu.memory_space<vmem>>) attributes {dimension_semantics = [#tpu.dimension_semantics<parallel>], iteration_bounds = array<i64: 1>, scalar_prefetch = 0 : i64, scratch_operands = 0 : i64, tpu.core_type = #tpu.core_type<tc>, window_params = [{transform_indices = @transform_0, window_bounds = array<i64: 8, 208>}, {pipeline_mode = #tpu.pipeline_mode<synchronous>, transform_indices = @transform_1, window_bounds = array<i64: 208, 128>}, {transform_indices = @transform_2, window_bounds = array<i64: 8, 128>}]} {
    %c0 = arith.constant 0 : index
    %c0_0 = arith.constant 0 : index
    %0 = vector.load %arg1[%c0, %c0_0] : memref<8x208xf32, #tpu.memory_space<vmem>>, vector<8x208xf32>
    %c0_1 = arith.constant 0 : index
    %c0_2 = arith.constant 0 : index
    %1 = vector.load %arg2[%c0_1, %c0_2] : memref<208x128xf32, #tpu.memory_space<vmem>>, vector<208x128xf32>
    %cst = arith.constant dense<0.000000e+00> : vector<8x128xf32>
    %2 = tpu.matmul %0, %1, %cst {dimension_numbers = #tpu.dot_dimension_numbers<[1], [0], [0], [1], [0, 0, 1, 1], [], []>} : vector<8x208xf32>, vector<208x128xf32>, vector<8x128xf32> -> vector<8x128xf32>
    %c0_3 = arith.constant 0 : index
    %c0_4 = arith.constant 0 : index
    %3 = vector.load %arg3[%c0_3, %c0_4] : memref<8x128xf32, #tpu.memory_space<vmem>>, vector<8x128xf32>
    tpu.vector_store %arg3[%c0_3, %c0_4], %2 {strides = array<i32>} : memref<8x128xf32, #tpu.memory_space<vmem>>, vector<8x128xf32>,
    return
  }
  func.func @transform_0(%arg0: i32) -> (i32, i32) {
    %c0_i32 = arith.constant 0 : i32
    %c0_i32_0 = arith.constant 0 : i32
    return %arg0, %c0_i32 : i32, i32
  }
  func.func @transform_1(%arg0: i32) -> (i32, i32) {
    %c0_i32 = arith.constant 0 : i32
    %c0_i32_0 = arith.constant 0 : i32
    %c0_i32_1 = arith.constant 0 : i32
    return %c0_i32, %c0_i32_0 : i32, i32
  }
  func.func @transform_2(%arg0: i32) -> (i32, i32) {
    %c0_i32 = arith.constant 0 : i32
    %c0_i32_0 = arith.constant 0 : i32
    return %arg0, %c0_i32 : i32, i32
  }
}

</mosaic_0001>

<llo_original>
// kernel: o3_linear_apply.1
$region0: #{o3_linear_apply.1}
  #allocation0 [shape = 'u32[]', space=smem, size = 0x4, offset = 0x4, fixed_abs, tag = 'smem constant byte address 0x4 - core index']
  #allocation1 [shape = 'u32[144,128]{1,0:T(1,128)}', space=vmem, size = 0x12000, scoped, tag = 'internal scratch']
  %s0 = inlined_call_operand.vmem [shape: f32[4,208], index: 0, kind: input, shape index: {}]
  %s1 = inlined_call_operand.vmem [shape: f32[208,128], index: 1, kind: input, shape index: {}]
  %s2 = inlined_call_operand.vmem [shape: f32[4,128], index: 2, kind: output, shape index: {}]
  %s3 = sld [smem:[#allocation0]]
  $region48: #{o3_linear_apply.1} parent=0
    _
  %s5 = ssub.s32 1, %s3
  %s6 = scalar_select 0, %s5, %s3
  $region1: #{o3_linear_apply.1} parent=0
    #allocation2 [shape = 'u8[4096]{0}', space=vmem, size = 0x1000, scoped, tag = 'output window, operand 0, single buffered']
    // Predicated region
    $region2: #{o3_linear_apply.1} parent=1 // pred_check
      _
    $region3: #{o3_linear_apply.1} parent=1 // pred_check_branch
      %8 = sbr.rel (0) target = $region5
    $region4: #{o3_linear_apply.1} parent=1 // pred_region
      _
    $region5: #{o3_linear_apply.1} parent=1 // pred_fallthru
      _
    // Predicated region
    $region6: #{o3_linear_apply.1} parent=1 // pred_check
      _
    $region7: #{o3_linear_apply.1} parent=1 // pred_check_branch
      %10 = sbr.rel (0) target = $region9
    $region8: #{o3_linear_apply.1} parent=1 // pred_region
      _
    $region9: #{o3_linear_apply.1} parent=1 // pred_fallthru
      _
    %v11 = vld [vmem:[%s0] sm:$0xff]
    %v12 = vld [vmem:[%s0 + $0x8] sm:$0xff]
    %v13 = vld [vmem:[%s1] sm:$0xff]
    %v14 = vld [vmem:[%s1 + $0x8] sm:$0xff]
    %v15 = vld [vmem:[%s1 + $0x10] sm:$0xff]
    %v16 = vld [vmem:[%s1 + $0x18] sm:$0xff]
    %v17 = vld [vmem:[%s1 + $0x20] sm:$0xff]
    %v18 = vld [vmem:[%s1 + $0x28] sm:$0xff]
    %v19 = vld [vmem:[%s1 + $0x30] sm:$0xff]
    %v20 = vld [vmem:[%s1 + $0x38] sm:$0xff]
    %v21 = vld [vmem:[%s1 + $0x40] sm:$0xff]
    %v22 = vld [vmem:[%s1 + $0x48] sm:$0xff]
    %v23 = vld [vmem:[%s1 + $0x50] sm:$0xff]
    %v24 = vld [vmem:[%s1 + $0x58] sm:$0xff]
    %v25 = vld [vmem:[%s1 + $0x60] sm:$0xff]
    %v26 = vld [vmem:[%s1 + $0x68] sm:$0xff]
    %v27 = vld [vmem:[%s1 + $0x70] sm:$0xff]
    %v28 = vld [vmem:[%s1 + $0x78] sm:$0xff]
    %v29 = vld [vmem:[%s1 + $0x80] sm:$0xff]
    %v30 = vld [vmem:[%s1 + $0x88] sm:$0xff]
    %v31 = vld [vmem:[%s1 + $0x90] sm:$0xff]
    %v32 = vld [vmem:[%s1 + $0x98] sm:$0xff]
    %v33 = vld [vmem:[%s1 + $0xa0] sm:$0xff]
    %v34 = vld [vmem:[%s1 + $0xa8] sm:$0xff]
    %v35 = vld [vmem:[%s1 + $0xb0] sm:$0xff]
    %v36 = vld [vmem:[%s1 + $0xb8] sm:$0xff]
    %v37 = vld [vmem:[%s1 + $0xc0] sm:$0xff]
    %v38 = vld [vmem:[%s1 + $0xc8] sm:$0xff]
    %v41 = vcombine.low %v11, %v12
    %v42 = vcombine.high %v11, %v12
    %vm44 = vcmask 654336
    %v45 = vsel %vm44, %v42, 0
    %47 = vmatprep.subr.mxu0 0.0
    %48 = vmatpush1.msra.mxu0 %v13
    %49 = vmatprep.subr.mxu0 0.0
    %50 = vmatpush1.msra.mxu0 %v14
    %51 = vmatprep.subr.mxu0 0.0
    %52 = vmatpush1.msra.mxu0 %v15
    %53 = vmatprep.subr.mxu0 0.0
    %54 = vmatpush1.msra.mxu0 %v16
    %55 = vmatprep.subr.mxu0 0.0
    %56 = vmatpush1.msra.mxu0 %v17
    %57 = vmatprep.subr.mxu0 0.0
    %58 = vmatpush1.msra.mxu0 %v18
    %59 = vmatprep.subr.mxu0 0.0
    %60 = vmatpush1.msra.mxu0 %v19
    %61 = vmatprep.subr.mxu0 0.0
    %62 = vmatpush1.msra.mxu0 %v20
    %63 = vmatprep.subr.mxu0 0.0
    %64 = vmatpush1.msra.mxu0 %v21
    %65 = vmatprep.subr.mxu0 0.0
    %66 = vmatpush1.msra.mxu0 %v22
    %67 = vmatprep.subr.mxu0 0.0
    %68 = vmatpush1.msra.mxu0 %v23
    %69 = vmatprep.subr.mxu0 0.0
    %70 = vmatpush1.msra.mxu0 %v24
    %71 = vmatprep.subr.mxu0 0.0
    %72 = vmatpush1.msra.mxu0 %v25
    %73 = vmatprep.subr.mxu0 0.0
    %74 = vmatpush1.msra.mxu0 %v26
    %75 = vmatprep.subr.mxu0 0.0
    %76 = vmatpush1.msra.mxu0 %v27
    %77 = vmatprep.subr.mxu0 0.0
    %78 = vmatpush1.msra.mxu0 %v28
    %79 = vmatprep.subr.mxu0 0.0
    %80 = vmatpush1.msra.mxu0 %v29
    %81 = vmatprep.subr.mxu0 0.0
    %82 = vmatpush1.msra.mxu0 %v30
    %83 = vmatprep.subr.mxu0 0.0
    %84 = vmatpush1.msra.mxu0 %v31
    %85 = vmatprep.subr.mxu0 0.0
    %86 = vmatpush1.msra.mxu0 %v32
    %87 = vmatprep.subr.mxu0 0.0
    %88 = vmatpush1.msra.mxu0 %v33
    %89 = vmatprep.subr.mxu0 0.0
    %90 = vmatpush1.msra.mxu0 %v34
    %91 = vmatprep.subr.mxu0 0.0
    %92 = vmatpush1.msra.mxu0 %v35
    %93 = vmatprep.subr.mxu0 0.0
    %94 = vmatpush1.msra.mxu0 %v36
    %95 = vmatprep.subr.mxu0 0.0
    %96 = vmatpush1.msra.mxu0 %v37
    %97 = vmatprep.subr.mxu0 0.0
    %98 = vmatpush1.msra.mxu0 %v38
    %99 = vmatprep.subr.mxu0 0.0
    %100 = vmatpush1.msra.mxu0 0.0
    %101 = vmatprep.subr.mxu0 0.0
    %102 = vmatpush1.msra.mxu0 0.0
    %103 = vmatprep.subr.mxu0 0.0
    %104 = vmatpush1.msra.mxu0 0.0
    %105 = vmatprep.subr.mxu0 0.0
    %106 = vmatpush1.msra.mxu0 0.0
    %107 = vmatprep.subr.mxu0 0.0
    %108 = vmatpush1.msra.mxu0 0.0
    %109 = vmatprep.subr.mxu0 0.0
    %110 = vmatpush1.msra.mxu0 0.0
    %111 = vmatprep.mubr.f32.mxu0 %v45
    %112 = vmatmul.mubr.f32.gmra.mrb[0].mxu0 %v41
    %v113 = vpop.f32.mrb[0].mxu0
    %v114 = vadd.f32 0.0, %v113
    %v115 = vpop.f32.mrb[0].mxu0
    %116 = vdwg.mxu0
    %117 = vst [vmem:[#allocation2] sm:$0xff] %v114
    // Predicated region
    $region10: #{o3_linear_apply.1} parent=1 // pred_check
      _
    $region11: #{o3_linear_apply.1} parent=1 // pred_check_branch
      %119 = sbr.rel (0) target = $region13
    $region12: #{o3_linear_apply.1} parent=1 // pred_region
      // Predicated region
      $region14: #{o3_linear_apply.1} parent=12 // pred_check
        _
      $region15: #{o3_linear_apply.1} parent=12 // pred_check_branch
        %121 = sbr.rel (0) target = $region17
      $region16: #{o3_linear_apply.1} parent=12 // pred_region
        // Predicated region
        $region18: #{o3_linear_apply.1} parent=16 // pred_check
          _
        $region19: #{o3_linear_apply.1} parent=16 // pred_check_branch
          %123 = sbr.rel target = $region21
        $region20: #{o3_linear_apply.1} parent=16 // pred_region
          // Predicated region
          $region33: #{o3_linear_apply.1} parent=20 // pred_check
            _
          $region34: #{o3_linear_apply.1} parent=20 // pred_check_branch
            %138 = sbr.rel (0) target = $region36
          $region35: #{o3_linear_apply.1} parent=20 // pred_region
            loop: start=0, step=1, limit=1
            $region37: #{o3_linear_apply.1} parent=35 // loop_pre_header
              _
            $region38: #{o3_linear_apply.1} parent=35 // loop_header
              %s141 = sphi 0, %s145
              %p142 = scmp.ge.s32.totalorder %s141, 1
              %s146 = sphi [#allocation2], [#allocation2]
              %s147 = sphi %s2, %s2
            $region39: #{o3_linear_apply.1} parent=35 // loop_header_branch
              %144 = sbr.rel (%p142) target = $region43
            $region40: #{o3_linear_apply.1} parent=35 // loop_body
              %v148 = vld [vmem:[%s146] sm:$0xf]
              %149 = vst [vmem:[%s147] sm:$0xf] %v148
            $region41: #{o3_linear_apply.1} parent=35 // loop_footer
              %s145 = sadd.s32 1, %s141
            $region42: #{o3_linear_apply.1} parent=35 // loop_footer_branch
              %140 = sbr.rel target = $region38
            $region43: #{o3_linear_apply.1} parent=35 // loop_exit
              _
          $region36: #{o3_linear_apply.1} parent=20 // pred_fallthru
            _
        $region21: #{o3_linear_apply.1} parent=16 // pred_fallthru
          _
        // Predicated region
        $region22: #{o3_linear_apply.1} parent=16 // pred_check
          _
        $region23: #{o3_linear_apply.1} parent=16 // pred_check_branch
          %125 = sbr.rel (0) target = $region25
        $region24: #{o3_linear_apply.1} parent=16 // pred_region
          loop: start=0, step=1, limit=1
          $region26: #{o3_linear_apply.1} parent=24 // loop_pre_header
            _
          $region27: #{o3_linear_apply.1} parent=24 // loop_header
            %s128 = sphi 0, %s132
            %p129 = scmp.ge.s32.totalorder %s128, 1
            %s133 = sphi [#allocation2], [#allocation2]
            %s134 = sphi %s2, %s2
          $region28: #{o3_linear_apply.1} parent=24 // loop_header_branch
            %131 = sbr.rel (%p129) target = $region32
          $region29: #{o3_linear_apply.1} parent=24 // loop_body
            %v135 = vld [vmem:[%s133] sm:$0xf]
            %136 = vst [vmem:[%s134] sm:$0xf] %v135
          $region30: #{o3_linear_apply.1} parent=24 // loop_footer
            %s132 = sadd.s32 1, %s128
          $region31: #{o3_linear_apply.1} parent=24 // loop_footer_branch
            %127 = sbr.rel target = $region27
          $region32: #{o3_linear_apply.1} parent=24 // loop_exit
            _
        $region25: #{o3_linear_apply.1} parent=16 // pred_fallthru
          _
      $region17: #{o3_linear_apply.1} parent=12 // pred_fallthru
        _
      %150 = vnop
    $region13: #{o3_linear_apply.1} parent=1 // pred_fallthru
      _
    // Predicated region
    $region44: #{o3_linear_apply.1} parent=1 // pred_check
      _
    $region45: #{o3_linear_apply.1} parent=1 // pred_check_branch
      %152 = sbr.rel (0) target = $region47
    $region46: #{o3_linear_apply.1} parent=1 // pred_region
      _
    $region47: #{o3_linear_apply.1} parent=1 // pred_fallthru
      _

</llo_original>
